<compile_context>
chip_gen: v6e
topology: v6e:2x2x1
jax: 0.10.0
libtpu: 0.0.40
codegen_flags: <defaults>
</compile_context>

<pallas_src>
import jax
import jax.numpy as jnp
from jax.experimental import pallas as pl
from jax.experimental.pallas import tpu as pltpu

# ---- "cfg.ddpg" constants (synthetic, small) -------------------------------
STATE_DIM = 4
ACTION_DIM = 2
ACTION_SCALING = 2.0
ACTION_BIAS = 0.5

HIDDEN = [32, 64, 128, 64, 32, 16]
DIMS = [STATE_DIM] + HIDDEN + [ACTION_DIM]        # [4,32,64,128,64,32,16,2]
NUM_LAYERS = len(DIMS) - 1                        # 7 linear layers


def _round8(n):
    return -(-n // 8) * 8


IN_ROUND = [_round8(DIMS[l]) for l in range(NUM_LAYERS)]       # [8,32,64,128,64,32,16]
OUT_ROUND = [_round8(DIMS[l + 1]) for l in range(NUM_LAYERS)]  # [32,64,128,64,32,16,8]

HID_MAX = 128            # padded sublane extent of the packed weight slab
IN_PAD = IN_ROUND[0]     # 8: input-feature rows = one f32 sublane group
OUT_PAD = OUT_ROUND[-1]  # 8: output-action rows = one f32 sublane group


def actor_kernel(x_ref, w_ref, b_ref, o_ref):
    """One (IN_PAD, TB) feature-major batch tile through all 7 layers.

    x_ref: (8, TB)       f32 state tile (rows >= STATE_DIM are zero).
    w_ref: (7, 128, 128) bf16 zero-padded weight slab (VMEM-resident).
    b_ref: (7, 128, 1)   f32 zero-padded bias columns (per-sublane bias).
    o_ref: (8, TB)       f32 lane-dense output tile.
    """
    h = x_ref[...]                                            # (8, TB) f32
    for l in range(NUM_LAYERS):
        in_r, out_r = IN_ROUND[l], OUT_ROUND[l]
        # bf16 x bf16 operands, f32 accumulation on the MXU; only the real
        # (8-rounded) rows/cols of this layer participate.
        z = jnp.dot(w_ref[l, :out_r, :in_r], h.astype(jnp.bfloat16),
                    preferred_element_type=jnp.float32)
        z = z + b_ref[l, :out_r, :]                           # f32 bias (lane bcast)
        if l < NUM_LAYERS - 1:
            h = jnp.maximum(z, 0.0)                           # f32 ReLU
        else:
            h = jnp.tanh(z) * ACTION_SCALING + ACTION_BIAS    # f32 tanh + affine
    o_ref[...] = h                                            # (8, TB) unmasked store


def init_params(key):
    """PyTorch nn.Linear-style init: W (out,in), b (out,), U(-1/sqrt(fan_in), ..)."""
    params = []
    for i in range(NUM_LAYERS):
        fan_in, fan_out = DIMS[i], DIMS[i + 1]
        key, kw, kb = jax.random.split(key, 3)
        bound = 1.0 / jnp.sqrt(jnp.float32(fan_in))
        w = jax.random.uniform(kw, (fan_out, fan_in), jnp.float32, -bound, bound)
        b = jax.random.uniform(kb, (fan_out,), jnp.float32, -bound, bound)
        params.append((w, b))
    return params


def pack_params(params):
    """Zero-pad all layers into one bf16 weight slab + one f32 bias slab."""
    wslab = jnp.zeros((NUM_LAYERS, HID_MAX, HID_MAX), jnp.float32)
    bslab = jnp.zeros((NUM_LAYERS, HID_MAX, 1), jnp.float32)
    for l, (w, b) in enumerate(params):
        out_d, in_d = w.shape
        wslab = wslab.at[l, :out_d, :in_d].set(w)
        bslab = bslab.at[l, :out_d, 0].set(b)
    return wslab.astype(jnp.bfloat16), bslab


def _choose_tb(batch):
    """Batch (lane) tile size.

    As fat as possible (amortizes per-grid-step overhead on single-core
    v5e/v6e), but keeps >= 2 grid steps once the batch allows it so the
    'parallel' grid axis spans both v7x TensorCores.  Always a multiple of
    128 lanes; capped so per-step VMEM stays tiny.
    """
    if batch <= 256:
        return 256
    half = -(-batch // 2)              # ceil(batch / 2) -> at least 2 tiles
    tb = -(-half // 128) * 128         # round up to whole 128-lane vregs
    return min(tb, 1024)


@jax.jit
def actor_forward(state, wslab, bslab):
    B = state.shape[0]
    TB = _choose_tb(B)
    n_tiles = pl.cdiv(B, TB)
    b_pad = n_tiles * TB

    # Feature-major, zero-padded input slab: only 8 sublane rows (4 real).
    x = jnp.zeros((IN_PAD, b_pad), jnp.float32)
    x = x.at[:STATE_DIM, :B].set(state.T)

    flops = 2 * sum(IN_ROUND[l] * OUT_ROUND[l] for l in range(NUM_LAYERS)) * b_pad
    bytes_accessed = (x.size * 4 + wslab.size * 2 + bslab.size * 4
                      + OUT_PAD * b_pad * 4)
    cost = pl.CostEstimate(flops=flops,
                           transcendentals=OUT_PAD * b_pad,
                           bytes_accessed=bytes_accessed)

    out = pl.pallas_call(
        actor_kernel,
        out_shape=jax.ShapeDtypeStruct((OUT_PAD, b_pad), jnp.float32),
        grid=(n_tiles,),
        in_specs=[
            # batch tile advances with the grid
            pl.BlockSpec((IN_PAD, TB), lambda i: (0, i)),
            # parameters: constant index_map -> DMA'd once, VMEM-resident
            pl.BlockSpec((NUM_LAYERS, HID_MAX, HID_MAX), lambda i: (0, 0, 0)),
            pl.BlockSpec((NUM_LAYERS, HID_MAX, 1), lambda i: (0, 0, 0)),
        ],
        out_specs=pl.BlockSpec((OUT_PAD, TB), lambda i: (0, i)),
        compiler_params=pltpu.CompilerParams(
            dimension_semantics=("parallel",)),
        cost_estimate=cost,
    )(x, wslab, bslab)

    # Back to (B, ACTION_DIM), dropping row padding and batch-column padding.
    return out[:ACTION_DIM, :B].T


def actor_forward_ref(state, params):
    """Pure-JAX f32 reference mirroring the PyTorch forward exactly."""
    h = state
    for i, (w, b) in enumerate(params):
        h = h @ w.T + b
        h = jnp.maximum(h, 0.0) if i < NUM_LAYERS - 1 else jnp.tanh(h)
    return h * ACTION_SCALING + ACTION_BIAS


def actor_forward_ref_bf16(state, params):
    """Reference mimicking the kernel's bf16-operand / f32-accumulate dots."""
    h = state
    for i, (w, b) in enumerate(params):
        z = jnp.dot(h.astype(jnp.bfloat16), w.astype(jnp.bfloat16).T,
                    preferred_element_type=jnp.float32) + b
        h = jnp.maximum(z, 0.0) if i < NUM_LAYERS - 1 else jnp.tanh(z)
    return h * ACTION_SCALING + ACTION_BIAS


if __name__ == "__main__":
    key = jax.random.PRNGKey(0)
    k_params, k_state = jax.random.split(key)

    params = init_params(k_params)
    wslab, bslab = pack_params(params)

    B = 512  # -> TB=256, two "parallel" grid tiles (keeps both v7x cores busy)
    state = jax.random.normal(k_state, (B, STATE_DIM), jnp.float32)

    out = jax.block_until_ready(actor_forward(state, wslab, bslab))

    assert out.shape == (B, ACTION_DIM)
    # Tight check vs a reference using the kernel's bf16/f32-accumulate math.
    ref_bf16 = actor_forward_ref_bf16(state, params)
    assert jnp.allclose(out, ref_bf16, atol=1e-3, rtol=1e-3), "mismatch vs bf16 reference"
    # Looser check vs the exact f32 PyTorch-equivalent forward (bf16 weight quantization).
    ref_f32 = actor_forward_ref(state, params)
    assert jnp.allclose(out, ref_f32, atol=5e-2, rtol=5e-2), "mismatch vs f32 reference"

    print("KERNEL_OK")
</pallas_src>

<mosaic_0001>
module attributes {stable_mosaic.version = 11 : i64} {
  func.func @actor_kernel(%arg0: i32, %arg1: memref<8x256xf32, #tpu.memory_space<vmem>>, %arg2: memref<7x128x128xbf16, #tpu.memory_space<vmem>>, %arg3: memref<7x128x1xf32, #tpu.memory_space<vmem>>, %arg4: memref<8x256xf32, #tpu.memory_space<vmem>>) attributes {dimension_semantics = [#tpu.dimension_semantics<parallel>], iteration_bounds = array<i64: 2>, scalar_prefetch = 0 : i64, scratch_operands = 0 : i64, tpu.core_type = #tpu.core_type<tc>, window_params = [{transform_indices = @transform_0, window_bounds = array<i64: 8, 256>}, {pipeline_mode = #tpu.pipeline_mode<synchronous>, transform_indices = @transform_1, window_bounds = array<i64: 7, 128, 128>}, {pipeline_mode = #tpu.pipeline_mode<synchronous>, transform_indices = @transform_2, window_bounds = array<i64: 7, 128, 1>}, {transform_indices = @transform_3, window_bounds = array<i64: 8, 256>}]} {
    %c0 = arith.constant 0 : index
    %c0_0 = arith.constant 0 : index
    %0 = vector.load %arg1[%c0, %c0_0] : memref<8x256xf32, #tpu.memory_space<vmem>>, vector<8x256xf32>
    %c0_1 = arith.constant 0 : index
    %c0_2 = arith.constant 0 : index
    %c0_3 = arith.constant 0 : index
    %1 = vector.load %arg2[%c0_1, %c0_2, %c0_3] : memref<7x128x128xbf16, #tpu.memory_space<vmem>>, vector<1x32x8xbf16>
    %2 = vector.shape_cast %1 : vector<1x32x8xbf16> to vector<32x8xbf16>
    %3 = arith.truncf %0 : vector<8x256xf32> to vector<8x256xbf16>
    %cst = arith.constant dense<0.000000e+00> : vector<32x256xf32>
    %4 = tpu.matmul %2, %3, %cst {dimension_numbers = #tpu.dot_dimension_numbers<[1], [0], [0], [1], [0, 0, 1, 1], [], []>} : vector<32x8xbf16>, vector<8x256xbf16>, vector<32x256xf32> -> vector<32x256xf32>
    %c0_4 = arith.constant 0 : index
    %c0_5 = arith.constant 0 : index
    %c0_6 = arith.constant 0 : index
    %5 = vector.load %arg3[%c0_4, %c0_5, %c0_6] : memref<7x128x1xf32, #tpu.memory_space<vmem>>, vector<1x32x1xf32>
    %6 = vector.shape_cast %5 : vector<1x32x1xf32> to vector<32x1xf32>
    %7 = vector.broadcast %6 : vector<32x1xf32> to vector<32x256xf32>
    %8 = arith.addf %4, %7 : vector<32x256xf32>
    %cst_7 = arith.constant 0.000000e+00 : f32
    %9 = vector.broadcast %cst_7 : f32 to vector<32x256xf32>
    %10 = arith.maximumf %8, %9 : vector<32x256xf32>
    %c1 = arith.constant 1 : index
    %c0_8 = arith.constant 0 : index
    %c0_9 = arith.constant 0 : index
    %11 = vector.load %arg2[%c1, %c0_8, %c0_9] : memref<7x128x128xbf16, #tpu.memory_space<vmem>>, vector<1x64x32xbf16>
    %12 = vector.shape_cast %11 : vector<1x64x32xbf16> to vector<64x32xbf16>
    %13 = arith.truncf %10 : vector<32x256xf32> to vector<32x256xbf16>
    %cst_10 = arith.constant dense<0.000000e+00> : vector<64x256xf32>
    %14 = tpu.matmul %12, %13, %cst_10 {dimension_numbers = #tpu.dot_dimension_numbers<[1], [0], [0], [1], [0, 0, 1, 1], [], []>} : vector<64x32xbf16>, vector<32x256xbf16>, vector<64x256xf32> -> vector<64x256xf32>
    %c1_11 = arith.constant 1 : index
    %c0_12 = arith.constant 0 : index
    %c0_13 = arith.constant 0 : index
    %15 = vector.load %arg3[%c1_11, %c0_12, %c0_13] : memref<7x128x1xf32, #tpu.memory_space<vmem>>, vector<1x64x1xf32>
    %16 = vector.shape_cast %15 : vector<1x64x1xf32> to vector<64x1xf32>
    %17 = vector.broadcast %16 : vector<64x1xf32> to vector<64x256xf32>
    %18 = arith.addf %14, %17 : vector<64x256xf32>
    %cst_14 = arith.constant 0.000000e+00 : f32
    %19 = vector.broadcast %cst_14 : f32 to vector<64x256xf32>
    %20 = arith.maximumf %18, %19 : vector<64x256xf32>
    %c2 = arith.constant 2 : index
    %c0_15 = arith.constant 0 : index
    %c0_16 = arith.constant 0 : index
    %21 = vector.load %arg2[%c2, %c0_15, %c0_16] : memref<7x128x128xbf16, #tpu.memory_space<vmem>>, vector<1x128x64xbf16>
    %22 = vector.shape_cast %21 : vector<1x128x64xbf16> to vector<128x64xbf16>
    %23 = arith.truncf %20 : vector<64x256xf32> to vector<64x256xbf16>
    %cst_17 = arith.constant dense<0.000000e+00> : vector<128x256xf32>
    %24 = tpu.matmul %22, %23, %cst_17 {dimension_numbers = #tpu.dot_dimension_numbers<[1], [0], [0], [1], [0, 0, 1, 1], [], []>} : vector<128x64xbf16>, vector<64x256xbf16>, vector<128x256xf32> -> vector<128x256xf32>
    %c2_18 = arith.constant 2 : index
    %c0_19 = arith.constant 0 : index
    %c0_20 = arith.constant 0 : index
    %25 = vector.load %arg3[%c2_18, %c0_19, %c0_20] : memref<7x128x1xf32, #tpu.memory_space<vmem>>, vector<1x128x1xf32>
    %26 = vector.shape_cast %25 : vector<1x128x1xf32> to vector<128x1xf32>
    %27 = vector.broadcast %26 : vector<128x1xf32> to vector<128x256xf32>
    %28 = arith.addf %24, %27 : vector<128x256xf32>
    %cst_21 = arith.constant 0.000000e+00 : f32
    %29 = vector.broadcast %cst_21 : f32 to vector<128x256xf32>
    %30 = arith.maximumf %28, %29 : vector<128x256xf32>
    %c3 = arith.constant 3 : index
    %c0_22 = arith.constant 0 : index
    %c0_23 = arith.constant 0 : index
    %31 = vector.load %arg2[%c3, %c0_22, %c0_23] : memref<7x128x128xbf16, #tpu.memory_space<vmem>>, vector<1x64x128xbf16>
    %32 = vector.shape_cast %31 : vector<1x64x128xbf16> to vector<64x128xbf16>
    %33 = arith.truncf %30 : vector<128x256xf32> to vector<128x256xbf16>
    %cst_24 = arith.constant dense<0.000000e+00> : vector<64x256xf32>
    %34 = tpu.matmul %32, %33, %cst_24 {dimension_numbers = #tpu.dot_dimension_numbers<[1], [0], [0], [1], [0, 0, 1, 1], [], []>} : vector<64x128xbf16>, vector<128x256xbf16>, vector<64x256xf32> -> vector<64x256xf32>
    %c3_25 = arith.constant 3 : index
    %c0_26 = arith.constant 0 : index
    %c0_27 = arith.constant 0 : index
    %35 = vector.load %arg3[%c3_25, %c0_26, %c0_27] : memref<7x128x1xf32, #tpu.memory_space<vmem>>, vector<1x64x1xf32>
    %36 = vector.shape_cast %35 : vector<1x64x1xf32> to vector<64x1xf32>
    %37 = vector.broadcast %36 : vector<64x1xf32> to vector<64x256xf32>
    %38 = arith.addf %34, %37 : vector<64x256xf32>
    %cst_28 = arith.constant 0.000000e+00 : f32
    %39 = vector.broadcast %cst_28 : f32 to vector<64x256xf32>
    %40 = arith.maximumf %38, %39 : vector<64x256xf32>
    %c4 = arith.constant 4 : index
    %c0_29 = arith.constant 0 : index
    %c0_30 = arith.constant 0 : index
    %41 = vector.load %arg2[%c4, %c0_29, %c0_30] : memref<7x128x128xbf16, #tpu.memory_space<vmem>>, vector<1x32x64xbf16>
    %42 = vector.shape_cast %41 : vector<1x32x64xbf16> to vector<32x64xbf16>
    %43 = arith.truncf %40 : vector<64x256xf32> to vector<64x256xbf16>
    %cst_31 = arith.constant dense<0.000000e+00> : vector<32x256xf32>
    %44 = tpu.matmul %42, %43, %cst_31 {dimension_numbers = #tpu.dot_dimension_numbers<[1], [0], [0], [1], [0, 0, 1, 1], [], []>} : vector<32x64xbf16>, vector<64x256xbf16>, vector<32x256xf32> -> vector<32x256xf32>
    %c4_32 = arith.constant 4 : index
    %c0_33 = arith.constant 0 : index
    %c0_34 = arith.constant 0 : index
    %45 = vector.load %arg3[%c4_32, %c0_33, %c0_34] : memref<7x128x1xf32, #tpu.memory_space<vmem>>, vector<1x32x1xf32>
    %46 = vector.shape_cast %45 : vector<1x32x1xf32> to vector<32x1xf32>
    %47 = vector.broadcast %46 : vector<32x1xf32> to vector<32x256xf32>
    %48 = arith.addf %44, %47 : vector<32x256xf32>
    %cst_35 = arith.constant 0.000000e+00 : f32
    %49 = vector.broadcast %cst_35 : f32 to vector<32x256xf32>
    %50 = arith.maximumf %48, %49 : vector<32x256xf32>
    %c5 = arith.constant 5 : index
    %c0_36 = arith.constant 0 : index
    %c0_37 = arith.constant 0 : index
    %51 = vector.load %arg2[%c5, %c0_36, %c0_37] : memref<7x128x128xbf16, #tpu.memory_space<vmem>>, vector<1x16x32xbf16>
    %52 = vector.shape_cast %51 : vector<1x16x32xbf16> to vector<16x32xbf16>
    %53 = arith.truncf %50 : vector<32x256xf32> to vector<32x256xbf16>
    %cst_38 = arith.constant dense<0.000000e+00> : vector<16x256xf32>
    %54 = tpu.matmul %52, %53, %cst_38 {dimension_numbers = #tpu.dot_dimension_numbers<[1], [0], [0], [1], [0, 0, 1, 1], [], []>} : vector<16x32xbf16>, vector<32x256xbf16>, vector<16x256xf32> -> vector<16x256xf32>
    %c5_39 = arith.constant 5 : index
    %c0_40 = arith.constant 0 : index
    %c0_41 = arith.constant 0 : index
    %55 = vector.load %arg3[%c5_39, %c0_40, %c0_41] : memref<7x128x1xf32, #tpu.memory_space<vmem>>, vector<1x16x1xf32>
    %56 = vector.shape_cast %55 : vector<1x16x1xf32> to vector<16x1xf32>
    %57 = vector.broadcast %56 : vector<16x1xf32> to vector<16x256xf32>
    %58 = arith.addf %54, %57 : vector<16x256xf32>
    %cst_42 = arith.constant 0.000000e+00 : f32
    %59 = vector.broadcast %cst_42 : f32 to vector<16x256xf32>
    %60 = arith.maximumf %58, %59 : vector<16x256xf32>
    %c6 = arith.constant 6 : index
    %c0_43 = arith.constant 0 : index
    %c0_44 = arith.constant 0 : index
    %61 = vector.load %arg2[%c6, %c0_43, %c0_44] : memref<7x128x128xbf16, #tpu.memory_space<vmem>>, vector<1x8x16xbf16>
    %62 = vector.shape_cast %61 : vector<1x8x16xbf16> to vector<8x16xbf16>
    %63 = arith.truncf %60 : vector<16x256xf32> to vector<16x256xbf16>
    %cst_45 = arith.constant dense<0.000000e+00> : vector<8x256xf32>
    %64 = tpu.matmul %62, %63, %cst_45 {dimension_numbers = #tpu.dot_dimension_numbers<[1], [0], [0], [1], [0, 0, 1, 1], [], []>} : vector<8x16xbf16>, vector<16x256xbf16>, vector<8x256xf32> -> vector<8x256xf32>
    %c6_46 = arith.constant 6 : index
    %c0_47 = arith.constant 0 : index
    %c0_48 = arith.constant 0 : index
    %65 = vector.load %arg3[%c6_46, %c0_47, %c0_48] : memref<7x128x1xf32, #tpu.memory_space<vmem>>, vector<1x8x1xf32>
    %66 = vector.shape_cast %65 : vector<1x8x1xf32> to vector<8x1xf32>
    %67 = vector.broadcast %66 : vector<8x1xf32> to vector<8x256xf32>
    %68 = arith.addf %64, %67 : vector<8x256xf32>
    %69 = math.tanh %68 : vector<8x256xf32>
    %cst_49 = arith.constant 2.000000e+00 : f32
    %70 = vector.broadcast %cst_49 : f32 to vector<8x256xf32>
    %71 = arith.mulf %69, %70 : vector<8x256xf32>
    %cst_50 = arith.constant 5.000000e-01 : f32
    %72 = vector.broadcast %cst_50 : f32 to vector<8x256xf32>
    %73 = arith.addf %71, %72 : vector<8x256xf32>
    %c0_51 = arith.constant 0 : index
    %c0_52 = arith.constant 0 : index
    %74 = vector.load %arg4[%c0_51, %c0_52] : memref<8x256xf32, #tpu.memory_space<vmem>>, vector<8x256xf32>
    tpu.vector_store %arg4[%c0_51, %c0_52], %73 {strides = array<i32>} : memref<8x256xf32, #tpu.memory_space<vmem>>, vector<8x256xf32>,
    return
  }
  func.func @transform_0(%arg0: i32) -> (i32, i32) {
    %c0_i32 = arith.constant 0 : i32
    %c0_i32_0 = arith.constant 0 : i32
    return %c0_i32, %arg0 : i32, i32
  }
  func.func @transform_1(%arg0: i32) -> (i32, i32, i32) {
    %c0_i32 = arith.constant 0 : i32
    %c0_i32_0 = arith.constant 0 : i32
    %c0_i32_1 = arith.constant 0 : i32
    %c0_i32_2 = arith.constant 0 : i32
    return %c0_i32, %c0_i32_0, %c0_i32_1 : i32, i32, i32
  }
  func.func @transform_2(%arg0: i32) -> (i32, i32, i32) {
    %c0_i32 = arith.constant 0 : i32
    %c0_i32_0 = arith.constant 0 : i32
    %c0_i32_1 = arith.constant 0 : i32
    %c0_i32_2 = arith.constant 0 : i32
    return %c0_i32, %c0_i32_0, %c0_i32_1 : i32, i32, i32
  }
  func.func @transform_3(%arg0: i32) -> (i32, i32) {
    %c0_i32 = arith.constant 0 : i32
    %c0_i32_0 = arith.constant 0 : i32
    return %c0_i32, %arg0 : i32, i32
  }
}

</mosaic_0001>

<llo_original>
// kernel: actor_forward.1
$region0: #{actor_forward.1}
  #allocation0 [shape = 'u32[]', space=smem, size = 0x4, offset = 0x4, fixed_abs, tag = 'smem constant byte address 0x4 - core index']
  #allocation1 [shape = 'u32[144,128]{1,0:T(1,128)}', space=vmem, size = 0x12000, scoped, tag = 'internal scratch']
  %s0 = inlined_call_operand.vmem [shape: f32[8,512], index: 0, kind: input, shape index: {}]
  %s1 = inlined_call_operand.vmem [shape: bf16[7,128,128], index: 1, kind: input, shape index: {}]
  %s2 = inlined_call_operand.vmem [shape: f32[7,128,1], index: 2, kind: input, shape index: {}]
  %s3 = inlined_call_operand.vmem [shape: f32[8,512], index: 3, kind: output, shape index: {}]
  %s4 = sld [smem:[#allocation0]]
  $region45: #{actor_forward.1} parent=0
    _
  %s6 = ssub.s32 1, %s4
  %s7 = scalar_select 0, %s6, %s4
  loop: start=0, step=1, limit=4
  $region2: #{actor_forward.1} parent=0 // loop_pre_header
    _
  $region3: #{actor_forward.1} parent=0 // loop_header
    %s9 = sphi 0, %s13
    %p10 = scmp.ge.s32.totalorder %s9, 4
    %s19 = sphi 0, %s21
    %s22 = sphi 0, %s19
    %s23 = sphi 0, %s22
    %s39 = sphi 0, %s23
    %s43 = sphi 0, %s43
    %s45 = sphi 0, %s43
    %s46 = sphi 0, %s45
    %s60 = sphi 0, %s46
    %s64 = sphi 0, %s64
    %s66 = sphi 0, %s64
    %s67 = sphi 0, %s66
    %s81 = sphi 0, %s67
    %s87 = sphi 0, %s89
    %s90 = sphi 0, %s87
    %s91 = sphi 0, %s90
    %s107 = sphi 0, %s91
  $region4: #{actor_forward.1} parent=0 // loop_header_branch
    %12 = sbr.rel (%p10) target = $region8
  $region5: #{actor_forward.1} parent=0 // loop_body
    %s14 = ssub.s32 %s9, 1
    %s15 = ssub.s32 %s9, 2
    %s16 = sadd.s32 %s9, 1
    %s17 = ssub.s32 %s9, %s16
    %p18 = scmp.eq.s32.totalorder %s17, 0
    %s20 = sadd.s32 %s19, 1
    %s21 = scalar_select %p18, %s19, %s20
    %p24 = pneg %p18
    %p25 = scmp.eq.s32.totalorder %s9, 1
    %p26 = por %p24, %p25
    %p27 = scmp.ne.s32.totalorder %s19, %s22
    %p28 = scmp.eq.s32.totalorder %s9, 0
    %p29 = por %p27, %p28
    %p30 = scmp.ne.s32.totalorder %s19, %s22
    %p31 = scmp.eq.s32.totalorder %s14, 1
    %p32 = por %p30, %p31
    %p33 = scmp.ne.s32.totalorder %s22, %s23
    %p34 = scmp.eq.s32.totalorder %s14, 0
    %p35 = por %p33, %p34
    %p36 = scmp.ne.s32.totalorder %s22, %s23
    %p37 = scmp.eq.s32.totalorder %s15, 1
    %p38 = por %p36, %p37
    %p40 = scmp.ne.s32.totalorder %s23, %s39
    %p41 = scmp.eq.s32.totalorder %s15, 0
    %p42 = por %p40, %p41
    %s44 = sadd.s32 %s43, 1
    %p47 = scmp.eq.s32.totalorder %s9, 1
    %p48 = scmp.ne.s32.totalorder %s43, %s45
    %p49 = scmp.eq.s32.totalorder %s9, 0
    %p50 = por %p48, %p49
    %p51 = scmp.ne.s32.totalorder %s43, %s45
    %p52 = scmp.eq.s32.totalorder %s14, 1
    %p53 = por %p51, %p52
    %p54 = scmp.ne.s32.totalorder %s45, %s46
    %p55 = scmp.eq.s32.totalorder %s14, 0
    %p56 = por %p54, %p55
    %p57 = scmp.ne.s32.totalorder %s45, %s46
    %p58 = scmp.eq.s32.totalorder %s15, 1
    %p59 = por %p57, %p58
    %p61 = scmp.ne.s32.totalorder %s46, %s60
    %p62 = scmp.eq.s32.totalorder %s15, 0
    %p63 = por %p61, %p62
    %s65 = sadd.s32 %s64, 1
    %p68 = scmp.eq.s32.totalorder %s9, 1
    %p69 = scmp.ne.s32.totalorder %s64, %s66
    %p70 = scmp.eq.s32.totalorder %s9, 0
    %p71 = por %p69, %p70
    %p72 = scmp.ne.s32.totalorder %s64, %s66
    %p73 = scmp.eq.s32.totalorder %s14, 1
    %p74 = por %p72, %p73
    %p75 = scmp.ne.s32.totalorder %s66, %s67
    %p76 = scmp.eq.s32.totalorder %s14, 0
    %p77 = por %p75, %p76
    %p78 = scmp.ne.s32.totalorder %s66, %s67
    %p79 = scmp.eq.s32.totalorder %s15, 1
    %p80 = por %p78, %p79
    %p82 = scmp.ne.s32.totalorder %s67, %s81
    %p83 = scmp.eq.s32.totalorder %s15, 0
    %p84 = por %p82, %p83
    %s85 = ssub.s32 %s9, %s16
    %p86 = scmp.eq.s32.totalorder %s85, 0
    %s88 = sadd.s32 %s87, 1
    %s89 = scalar_select %p86, %s87, %s88
    %p92 = pneg %p86
    %p93 = scmp.eq.s32.totalorder %s9, 1
    %p94 = por %p92, %p93
    %p95 = scmp.ne.s32.totalorder %s87, %s90
    %p96 = scmp.eq.s32.totalorder %s9, 0
    %p97 = por %p95, %p96
    %p98 = scmp.ne.s32.totalorder %s87, %s90
    %p99 = scmp.eq.s32.totalorder %s14, 1
    %p100 = por %p98, %p99
    %p101 = scmp.ne.s32.totalorder %s90, %s91
    %p102 = scmp.eq.s32.totalorder %s14, 0
    %p103 = por %p101, %p102
    %p104 = scmp.ne.s32.totalorder %s90, %s91
    %p105 = scmp.eq.s32.totalorder %s15, 1
    %p106 = por %p104, %p105
    %p108 = scmp.ne.s32.totalorder %s91, %s107
    %p109 = scmp.eq.s32.totalorder %s15, 0
    %p110 = por %p108, %p109
    %p111 = scmp.le.s32.totalorder 1, %s9
    %p112 = scmp.lt.s32.totalorder %s9, 3
    %p113 = pnand %p111, %p112
    %p114 = pneg %p113
    // Predicated region
    $region9: #{actor_forward.1} parent=5 // pred_check
      _
    $region10: #{actor_forward.1} parent=5 // pred_check_branch
      %116 = sbr.rel (%p113) target = $region12
    $region11: #{actor_forward.1} parent=5 // pred_region
      %s117 = ssub.s32 %s9, 1
      // Predicated region
      $region13: #{actor_forward.1} parent=11 // pred_check
        %p118 = pneg %p56
      $region14: #{actor_forward.1} parent=11 // pred_check_branch
        %120 = sbr.rel (%p118) target = $region16
      $region15: #{actor_forward.1} parent=11 // pred_region
        _
      $region16: #{actor_forward.1} parent=11 // pred_fallthru
        _
      // Predicated region
      $region17: #{actor_forward.1} parent=11 // pred_check
        %p121 = pneg %p77
      $region18: #{actor_forward.1} parent=11 // pred_check_branch
        %123 = sbr.rel (%p121) target = $region20
      $region19: #{actor_forward.1} parent=11 // pred_region
        _
      $region20: #{actor_forward.1} parent=11 // pred_fallthru
        _
    $region12: #{actor_forward.1} parent=5 // pred_fallthru
      _
    %p124 = scmp.lt.s32.totalorder %s9, 2
    // Predicated region
    $region21: #{actor_forward.1} parent=5 // pred_check
      %p125 = pneg %p124
    $region22: #{actor_forward.1} parent=5 // pred_check_branch
      %127 = sbr.rel (%p125) target = $region24
    $region23: #{actor_forward.1} parent=5 // pred_region
      // Predicated region
      $region25: #{actor_forward.1} parent=23 // pred_check
        %p128 = pneg %p29
      $region26: #{actor_forward.1} parent=23 // pred_check_branch
        %130 = sbr.rel (%p128) target = $region28
      $region27: #{actor_forward.1} parent=23 // pred_region
        %s131 = smul.u32 2, %s9
        %p132 = scmp.lt.s32.totalorder %s131, 3
        %s133 = scalar_select %p132, %s131, 3
        %s134 = smul.addr %s133, 8
        %s135 = scalar_lea.vmem %s0, %s134
        %s136 = smul.u32 2, %s9
      $region28: #{actor_forward.1} parent=23 // pred_fallthru
        _
    $region24: #{actor_forward.1} parent=5 // pred_fallthru
      _
    %p137 = scmp.le.s32.totalorder 1, %s9
    %p138 = scmp.lt.s32.totalorder %s9, 3
    %p139 = pnand %p137, %p138
    %p140 = pneg %p139
    // Predicated region
    $region29: #{actor_forward.1} parent=5 // pred_check
      _
    $region30: #{actor_forward.1} parent=5 // pred_check_branch
      %142 = sbr.rel (%p139) target = $region32
    $region31: #{actor_forward.1} parent=5 // pred_region
      %s143 = ssub.s32 %s9, 1
      %s144 = smul.u32 2, %s14
      %p145 = scmp.lt.s32.totalorder %s144, 3
      %s146 = scalar_select %p145, %s144, 3
      %s147 = smul.addr %s146, 8
      %s148 = scalar_lea.vmem %s0, %s147
      %p149 = pneg %p35
      %p150 = pneg %p32
      %p151 = pneg %p56
      %p152 = pneg %p53
      %p153 = pneg %p77
      %p154 = pneg %p74
      %p155 = pneg %p103
      %p156 = pneg %p100
      %s157 = smul.u32 2, %s14
      %p158 = scmp.lt.s32.totalorder %s157, 3
      %s159 = scalar_select %p158, %s157, 3
      %s160 = smul.addr %s159, 8
      %s161 = scalar_lea.vmem %s3, %s160
      %s162 = smul.u32 2, %s14
      %p163 = scmp.lt.s32.totalorder %s162, 3
      %s164 = scalar_select %p163, %s162, 3
      %s165 = smul.addr %s164, 8
      %s166 = scalar_lea.vmem %s0, %s165
      %s167 = smul.u32 2, %s14
      %s168 = smul.u32 2, %s14
      %p169 = scmp.lt.s32.totalorder %s168, 3
      %s170 = scalar_select %p169, %s168, 3
      %s171 = smul.addr %s170, 8
      %s172 = scalar_lea.vmem %s3, %s171
      %s173 = smul.u32 2, %s14
      %v175 = vld [vmem:[%s166] sm:$0xff]
      %v176 = vld [vmem:[%s166 + $0x8] sm:$0xff]
      %v177 = vld [vmem:[%s1] sm:$0xf]
      %v178 = vld [vmem:[%s1 + $0x4] sm:$0xf]
      %v179 = vld [vmem:[%s1 + $0x8] sm:$0xf]
      %v180 = vld [vmem:[%s1 + $0xc] sm:$0xf]
      %v181 = vpack.c.bf16 %v175, %v175
      %v182 = vpack.c.bf16 %v176, %v176
      %v183 = vld [vmem:[%s2] sm:$0xff]
      %v184 = vld [vmem:[%s2 + $0x8] sm:$0xff]
      %v185 = vld [vmem:[%s2 + $0x10] sm:$0xff]
      %v186 = vld [vmem:[%s2 + $0x18] sm:$0xff]
      %188 = vset.pattern.permute.xlu0 0
      %189 = vperm.xlu0 %188, %v183
      %v190 = vpop.permute.xlu0 %189
      %193 = vset.pattern.permute.xlu0 0
      %194 = vperm.xlu0 %193, %v184
      %v195 = vpop.permute.xlu0 %194
      %198 = vset.pattern.permute.xlu0 0
      %199 = vperm.xlu0 %198, %v185
      %v200 = vpop.permute.xlu0 %199
      %203 = vset.pattern.permute.xlu0 0
      %204 = vperm.xlu0 %203, %v186
      %v205 = vpop.permute.xlu0 %204
      %v211 = vunpack.c.l.b16 %v177
      %v212 = vunpack.c.l.b16 %v178
      %v213 = vunpack.c.l.b16 %v179
      %v214 = vunpack.c.l.b16 %v180
      %v215 = vpack.c.b16 %v212, %v211
      %v216 = vpack.c.b16 %v214, %v213
      %vm217 = vcmask 64512
      %v219 = vsel %vm217, %v215, 0
      %v222 = vsel %vm217, %v216, 0
      %vm224 = vcmask 1043456
      %v226 = vsel %vm224, %v181, 0
      %v229 = vsel %vm224, %v182, 0
      %231 = vmatprep.subr.bf16.mxu0 0
      %232 = vmatpush1.bf16.msra.mxu0 0
      %233 = vmatprep.subr.bf16.mxu0 0
      %234 = vmatpush1.bf16.msra.mxu0 0
      %235 = vmatprep.subr.bf16.mxu0 0
      %236 = vmatpush1.bf16.msra.mxu0 0
      %237 = vmatprep.subr.bf16.mxu0 0
      %238 = vmatpush1.bf16.msra.mxu0 0
      %239 = vmatprep.subr.bf16.mxu0 0
      %240 = vmatpush1.bf16.msra.mxu0 0
      %241 = vmatprep.subr.bf16.mxu0 0
      %242 = vmatpush1.bf16.msra.mxu0 0
      %243 = vmatprep.subr.bf16.mxu0 0
      %244 = vmatpush1.bf16.msra.mxu0 0
      %245 = vmatprep.subr.bf16.mxu0 %v229
      %246 = vmatpush1.bf16.msra.mxu0 %v226
      %247 = vmatprep.subr.bf16.mxu0 0
      %248 = vmatpush2.bf16.msra.mxu0 0
      %249 = vmatprep.subr.bf16.mxu0 0
      %250 = vmatpush2.bf16.msra.mxu0 0
      %251 = vmatprep.subr.bf16.mxu0 0
      %252 = vmatpush2.bf16.msra.mxu0 0
      %253 = vmatprep.subr.bf16.mxu0 0
      %254 = vmatpush2.bf16.msra.mxu0 0
      %255 = vmatprep.subr.bf16.mxu0 0
      %256 = vmatpush2.bf16.msra.mxu0 0
      %257 = vmatprep.subr.bf16.mxu0 0
      %258 = vmatpush2.bf16.msra.mxu0 0
      %259 = vmatprep.subr.bf16.mxu0 0
      %260 = vmatpush2.bf16.msra.mxu0 0
      %261 = vmatprep.subr.bf16.mxu0 0
      %262 = vmatpush2.bf16.msra.mxu0 0
      %263 = vmatprep.mubr.bf16.mxu0 0
      %264 = vmatmul.mubr.bf16.gmra.mxu0 %v219
      %v265 = vpop.f32.mrf.mxu0
      %v266 = vadd.f32 %v190, %v265
      %v267 = vpop.f32.mrf.mxu0
      %v268 = vadd.f32 %v190, %v267
      %v269 = vpop.f32.mrf.mxu0
      %v270 = vadd.f32 %v195, %v269
      %v271 = vpop.f32.mrf.mxu0
      %v272 = vadd.f32 %v195, %v271
      %273 = vmatprep.mubr.bf16.mxu0 0
      %274 = vmatmul.mubr.bf16.gmra.mxu0 %v222
      %v275 = vpop.f32.mrf.mxu0
      %v276 = vadd.f32 %v200, %v275
      %v277 = vpop.f32.mrf.mxu0
      %v278 = vadd.f32 %v200, %v277
      %v279 = vpop.f32.mrf.mxu0
      %v280 = vadd.f32 %v205, %v279
      %v281 = vpop.f32.mrf.mxu0
      %v282 = vadd.f32 %v205, %v281
      %283 = vdwg.mxu0
      %v284 = vmax.f32 %v266, 0.0
      %v285 = vmax.f32 %v268, 0.0
      %v286 = vmax.f32 %v270, 0.0
      %v287 = vmax.f32 %v272, 0.0
      %v288 = vmax.f32 %v276, 0.0
      %v289 = vmax.f32 %v278, 0.0
      %v290 = vmax.f32 %v280, 0.0
      %v291 = vmax.f32 %v282, 0.0
      %s292 = scalar_lea.vmem %s1, 64
      %v293 = vld [vmem:[%s292] sm:$0xf]
      %v294 = vld [vmem:[%s292 + $0x4] sm:$0xf]
      %v295 = vld [vmem:[%s292 + $0x8] sm:$0xf]
      %v296 = vld [vmem:[%s292 + $0xc] sm:$0xf]
      %v297 = vld [vmem:[%s292 + $0x10] sm:$0xf]
      %v298 = vld [vmem:[%s292 + $0x14] sm:$0xf]
      %v299 = vld [vmem:[%s292 + $0x18] sm:$0xf]
      %v300 = vld [vmem:[%s292 + $0x1c] sm:$0xf]
      %v301 = vpack.c.bf16 %v286, %v284
      %v302 = vpack.c.bf16 %v287, %v285
      %v303 = vpack.c.bf16 %v290, %v288
      %v304 = vpack.c.bf16 %v291, %v289
      %s305 = scalar_lea.vmem %s2, 128
      %v306 = vld [vmem:[%s305] sm:$0xff]
      %v307 = vld [vmem:[%s305 + $0x8] sm:$0xff]
      %v308 = vld [vmem:[%s305 + $0x10] sm:$0xff]
      %v309 = vld [vmem:[%s305 + $0x18] sm:$0xff]
      %v310 = vld [vmem:[%s305 + $0x20] sm:$0xff]
      %v311 = vld [vmem:[%s305 + $0x28] sm:$0xff]
      %v312 = vld [vmem:[%s305 + $0x30] sm:$0xff]
      %v313 = vld [vmem:[%s305 + $0x38] sm:$0xff]
      %315 = vset.pattern.permute.xlu0 0
      %316 = vperm.xlu0 %315, %v306
      %v317 = vpop.permute.xlu0 %316
      %320 = vset.pattern.permute.xlu0 0
      %321 = vperm.xlu0 %320, %v307
      %v322 = vpop.permute.xlu0 %321
      %325 = vset.pattern.permute.xlu0 0
      %326 = vperm.xlu0 %325, %v308
      %v327 = vpop.permute.xlu0 %326
      %330 = vset.pattern.permute.xlu0 0
      %331 = vperm.xlu0 %330, %v309
      %v332 = vpop.permute.xlu0 %331
      %335 = vset.pattern.permute.xlu0 0
      %336 = vperm.xlu0 %335, %v310
      %v337 = vpop.permute.xlu0 %336
      %340 = vset.pattern.permute.xlu0 0
      %341 = vperm.xlu0 %340, %v311
      %v342 = vpop.permute.xlu0 %341
      %345 = vset.pattern.permute.xlu0 0
      %346 = vperm.xlu0 %345, %v312
      %v347 = vpop.permute.xlu0 %346
      %350 = vset.pattern.permute.xlu0 0
      %351 = vperm.xlu0 %350, %v313
      %v352 = vpop.permute.xlu0 %351
      %v362 = vunpack.c.l.b16 %v293
      %v363 = vunpack.c.l.b16 %v294
      %v364 = vunpack.c.l.b16 %v295
      %v365 = vunpack.c.l.b16 %v296
      %v366 = vunpack.c.l.b16 %v297
      %v367 = vunpack.c.l.b16 %v298
      %v368 = vunpack.c.l.b16 %v299
      %v369 = vunpack.c.l.b16 %v300
      %v370 = vpack.c.b16 %v363, %v362
      %v371 = vpack.c.b16 %v365, %v364
      %v372 = vpack.c.b16 %v367, %v366
      %v373 = vpack.c.b16 %v369, %v368
      %vm374 = vcmask 261120
      %v376 = vsel %vm374, %v370, 0
      %v379 = vsel %vm374, %v371, 0
      %v382 = vsel %vm374, %v372, 0
      %v385 = vsel %vm374, %v373, 0
      %387 = vmatprep.subr.bf16.mxu0 0
      %388 = vmatpush1.bf16.msra.mxu0 0
      %389 = vmatprep.subr.bf16.mxu0 0
      %390 = vmatpush1.bf16.msra.mxu0 0
      %391 = vmatprep.subr.bf16.mxu0 0
      %392 = vmatpush1.bf16.msra.mxu0 0
      %393 = vmatprep.subr.bf16.mxu0 0
      %394 = vmatpush1.bf16.msra.mxu0 0
      %395 = vmatprep.subr.bf16.mxu0 0
      %396 = vmatpush1.bf16.msra.mxu0 0
      %397 = vmatprep.subr.bf16.mxu0 0
      %398 = vmatpush1.bf16.msra.mxu0 0
      %399 = vmatprep.subr.bf16.mxu0 %v304
      %400 = vmatpush1.bf16.msra.mxu0 %v303
      %401 = vmatprep.subr.bf16.mxu0 %v302
      %402 = vmatpush1.bf16.msra.mxu0 %v301
      %403 = vmatprep.subr.bf16.mxu0 0
      %404 = vmatpush2.bf16.msra.mxu0 0
      %405 = vmatprep.subr.bf16.mxu0 0
      %406 = vmatpush2.bf16.msra.mxu0 0
      %407 = vmatprep.subr.bf16.mxu0 0
      %408 = vmatpush2.bf16.msra.mxu0 0
      %409 = vmatprep.subr.bf16.mxu0 0
      %410 = vmatpush2.bf16.msra.mxu0 0
      %411 = vmatprep.subr.bf16.mxu0 0
      %412 = vmatpush2.bf16.msra.mxu0 0
      %413 = vmatprep.subr.bf16.mxu0 0
      %414 = vmatpush2.bf16.msra.mxu0 0
      %415 = vmatprep.subr.bf16.mxu0 0
      %416 = vmatpush2.bf16.msra.mxu0 0
      %417 = vmatprep.subr.bf16.mxu0 0
      %418 = vmatpush2.bf16.msra.mxu0 0
      %419 = vmatprep.mubr.bf16.mxu0 0
      %420 = vmatmul.mubr.bf16.gmra.mxu0 %v376
      %v421 = vpop.f32.mrf.mxu0
      %v422 = vadd.f32 %v317, %v421
      %v423 = vpop.f32.mrf.mxu0
      %v424 = vadd.f32 %v317, %v423
      %v425 = vpop.f32.mrf.mxu0
      %v426 = vadd.f32 %v322, %v425
      %v427 = vpop.f32.mrf.mxu0
      %v428 = vadd.f32 %v322, %v427
      %429 = vmatprep.mubr.bf16.mxu0 0
      %430 = vmatmul.mubr.bf16.gmra.mxu0 %v379
      %v431 = vpop.f32.mrf.mxu0
      %v432 = vadd.f32 %v327, %v431
      %v433 = vpop.f32.mrf.mxu0
      %v434 = vadd.f32 %v327, %v433
      %v435 = vpop.f32.mrf.mxu0
      %v436 = vadd.f32 %v332, %v435
      %v437 = vpop.f32.mrf.mxu0
      %v438 = vadd.f32 %v332, %v437
      %439 = vmatprep.mubr.bf16.mxu0 0
      %440 = vmatmul.mubr.bf16.gmra.mxu0 %v382
      %v441 = vpop.f32.mrf.mxu0
      %v442 = vadd.f32 %v337, %v441
      %v443 = vpop.f32.mrf.mxu0
      %v444 = vadd.f32 %v337, %v443
      %v445 = vpop.f32.mrf.mxu0
      %v446 = vadd.f32 %v342, %v445
      %v447 = vpop.f32.mrf.mxu0
      %v448 = vadd.f32 %v342, %v447
      %449 = vmatprep.mubr.bf16.mxu0 0
      %450 = vmatmul.mubr.bf16.gmra.mxu0 %v385
      %v451 = vpop.f32.mrf.mxu0
      %v452 = vadd.f32 %v347, %v451
      %v453 = vpop.f32.mrf.mxu0
      %v454 = vadd.f32 %v347, %v453
      %v455 = vpop.f32.mrf.mxu0
      %v456 = vadd.f32 %v352, %v455
      %v457 = vpop.f32.mrf.mxu0
      %v458 = vadd.f32 %v352, %v457
      %459 = vdwg.mxu0
      %v460 = vmax.f32 %v422, 0.0
      %v461 = vmax.f32 %v424, 0.0
      %v462 = vmax.f32 %v426, 0.0
      %v463 = vmax.f32 %v428, 0.0
      %v464 = vmax.f32 %v432, 0.0
      %v465 = vmax.f32 %v434, 0.0
      %v466 = vmax.f32 %v436, 0.0
      %v467 = vmax.f32 %v438, 0.0
      %v468 = vmax.f32 %v442, 0.0
      %v469 = vmax.f32 %v444, 0.0
      %v470 = vmax.f32 %v446, 0.0
      %v471 = vmax.f32 %v448, 0.0
      %v472 = vmax.f32 %v452, 0.0
      %v473 = vmax.f32 %v454, 0.0
      %v474 = vmax.f32 %v456, 0.0
      %v475 = vmax.f32 %v458, 0.0
      %s476 = scalar_lea.vmem %s1, 128
      %v477 = vld [vmem:[%s476] sm:$0xf]
      %v478 = vld [vmem:[%s476 + $0x4] sm:$0xf]
      %v479 = vld [vmem:[%s476 + $0x8] sm:$0xf]
      %v480 = vld [vmem:[%s476 + $0xc] sm:$0xf]
      %v481 = vld [vmem:[%s476 + $0x10] sm:$0xf]
      %v482 = vld [vmem:[%s476 + $0x14] sm:$0xf]
      %v483 = vld [vmem:[%s476 + $0x18] sm:$0xf]
      %v484 = vld [vmem:[%s476 + $0x1c] sm:$0xf]
      %v485 = vld [vmem:[%s476 + $0x20] sm:$0xf]
      %v486 = vld [vmem:[%s476 + $0x24] sm:$0xf]
      %v487 = vld [vmem:[%s476 + $0x28] sm:$0xf]
      %v488 = vld [vmem:[%s476 + $0x2c] sm:$0xf]
      %v489 = vld [vmem:[%s476 + $0x30] sm:$0xf]
      %v490 = vld [vmem:[%s476 + $0x34] sm:$0xf]
      %v491 = vld [vmem:[%s476 + $0x38] sm:$0xf]
      %v492 = vld [vmem:[%s476 + $0x3c] sm:$0xf]
      %v493 = vpack.c.bf16 %v462, %v460
      %v494 = vpack.c.bf16 %v463, %v461
      %v495 = vpack.c.bf16 %v466, %v464
      %v496 = vpack.c.bf16 %v467, %v465
      %v497 = vpack.c.bf16 %v470, %v468
      %v498 = vpack.c.bf16 %v471, %v469
      %v499 = vpack.c.bf16 %v474, %v472
      %v500 = vpack.c.bf16 %v475, %v473
      %s501 = scalar_lea.vmem %s2, 256
      %v502 = vld [vmem:[%s501] sm:$0xff]
      %v503 = vld [vmem:[%s501 + $0x8] sm:$0xff]
      %v504 = vld [vmem:[%s501 + $0x10] sm:$0xff]
      %v505 = vld [vmem:[%s501 + $0x18] sm:$0xff]
      %v506 = vld [vmem:[%s501 + $0x20] sm:$0xff]
      %v507 = vld [vmem:[%s501 + $0x28] sm:$0xff]
      %v508 = vld [vmem:[%s501 + $0x30] sm:$0xff]
      %v509 = vld [vmem:[%s501 + $0x38] sm:$0xff]
      %v510 = vld [vmem:[%s501 + $0x40] sm:$0xff]
      %v511 = vld [vmem:[%s501 + $0x48] sm:$0xff]
      %v512 = vld [vmem:[%s501 + $0x50] sm:$0xff]
      %v513 = vld [vmem:[%s501 + $0x58] sm:$0xff]
      %v514 = vld [vmem:[%s501 + $0x60] sm:$0xff]
      %v515 = vld [vmem:[%s501 + $0x68] sm:$0xff]
      %v516 = vld [vmem:[%s501 + $0x70] sm:$0xff]
      %v517 = vld [vmem:[%s501 + $0x78] sm:$0xff]
      %519 = vset.pattern.permute.xlu0 0
      %520 = vperm.xlu0 %519, %v502
      %v521 = vpop.permute.xlu0 %520
      %524 = vset.pattern.permute.xlu0 0
      %525 = vperm.xlu0 %524, %v503
      %v526 = vpop.permute.xlu0 %525
      %529 = vset.pattern.permute.xlu0 0
      %530 = vperm.xlu0 %529, %v504
      %v531 = vpop.permute.xlu0 %530
      %534 = vset.pattern.permute.xlu0 0
      %535 = vperm.xlu0 %534, %v505
      %v536 = vpop.permute.xlu0 %535
      %539 = vset.pattern.permute.xlu0 0
      %540 = vperm.xlu0 %539, %v506
      %v541 = vpop.permute.xlu0 %540
      %544 = vset.pattern.permute.xlu0 0
      %545 = vperm.xlu0 %544, %v507
      %v546 = vpop.permute.xlu0 %545
      %549 = vset.pattern.permute.xlu0 0
      %550 = vperm.xlu0 %549, %v508
      %v551 = vpop.permute.xlu0 %550
      %554 = vset.pattern.permute.xlu0 0
      %555 = vperm.xlu0 %554, %v509
      %v556 = vpop.permute.xlu0 %555
      %559 = vset.pattern.permute.xlu0 0
      %560 = vperm.xlu0 %559, %v510
      %v561 = vpop.permute.xlu0 %560
      %564 = vset.pattern.permute.xlu0 0
      %565 = vperm.xlu0 %564, %v511
      %v566 = vpop.permute.xlu0 %565
      %569 = vset.pattern.permute.xlu0 0
      %570 = vperm.xlu0 %569, %v512
      %v571 = vpop.permute.xlu0 %570
      %574 = vset.pattern.permute.xlu0 0
      %575 = vperm.xlu0 %574, %v513
      %v576 = vpop.permute.xlu0 %575
      %579 = vset.pattern.permute.xlu0 0
      %580 = vperm.xlu0 %579, %v514
      %v581 = vpop.permute.xlu0 %580
      %584 = vset.pattern.permute.xlu0 0
      %585 = vperm.xlu0 %584, %v515
      %v586 = vpop.permute.xlu0 %585
      %589 = vset.pattern.permute.xlu0 0
      %590 = vperm.xlu0 %589, %v516
      %v591 = vpop.permute.xlu0 %590
      %594 = vset.pattern.permute.xlu0 0
      %595 = vperm.xlu0 %594, %v517
      %v596 = vpop.permute.xlu0 %595
      %v614 = vunpack.c.l.b16 %v477
      %v615 = vunpack.c.l.b16 %v478
      %v616 = vunpack.c.l.b16 %v479
      %v617 = vunpack.c.l.b16 %v480
      %v618 = vunpack.c.l.b16 %v481
      %v619 = vunpack.c.l.b16 %v482
      %v620 = vunpack.c.l.b16 %v483
      %v621 = vunpack.c.l.b16 %v484
      %v622 = vunpack.c.l.b16 %v485
      %v623 = vunpack.c.l.b16 %v486
      %v624 = vunpack.c.l.b16 %v487
      %v625 = vunpack.c.l.b16 %v488
      %v626 = vunpack.c.l.b16 %v489
      %v627 = vunpack.c.l.b16 %v490
      %v628 = vunpack.c.l.b16 %v491
      %v629 = vunpack.c.l.b16 %v492
      %v630 = vpack.c.b16 %v615, %v614
      %v631 = vpack.c.b16 %v617, %v616
      %v632 = vpack.c.b16 %v619, %v618
      %v633 = vpack.c.b16 %v621, %v620
      %v634 = vpack.c.b16 %v623, %v622
      %v635 = vpack.c.b16 %v625, %v624
      %v636 = vpack.c.b16 %v627, %v626
      %v637 = vpack.c.b16 %v629, %v628
      %vm638 = vcmask 523264
      %v640 = vsel %vm638, %v630, 0
      %v643 = vsel %vm638, %v631, 0
      %v646 = vsel %vm638, %v632, 0
      %v649 = vsel %vm638, %v633, 0
      %v652 = vsel %vm638, %v634, 0
      %v655 = vsel %vm638, %v635, 0
      %v658 = vsel %vm638, %v636, 0
      %v661 = vsel %vm638, %v637, 0
      %663 = vmatprep.subr.bf16.mxu0 0
      %664 = vmatpush1.bf16.msra.mxu0 0
      %665 = vmatprep.subr.bf16.mxu0 0
      %666 = vmatpush1.bf16.msra.mxu0 0
      %667 = vmatprep.subr.bf16.mxu0 0
      %668 = vmatpush1.bf16.msra.mxu0 0
      %669 = vmatprep.subr.bf16.mxu0 0
      %670 = vmatpush1.bf16.msra.mxu0 0
      %671 = vmatprep.subr.bf16.mxu0 %v500
      %672 = vmatpush1.bf16.msra.mxu0 %v499
      %673 = vmatprep.subr.bf16.mxu0 %v498
      %674 = vmatpush1.bf16.msra.mxu0 %v497
      %675 = vmatprep.subr.bf16.mxu0 %v496
      %676 = vmatpush1.bf16.msra.mxu0 %v495
      %677 = vmatprep.subr.bf16.mxu0 %v494
      %678 = vmatpush1.bf16.msra.mxu0 %v493
      %679 = vmatprep.subr.bf16.mxu0 0
      %680 = vmatpush2.bf16.msra.mxu0 0
      %681 = vmatprep.subr.bf16.mxu0 0
      %682 = vmatpush2.bf16.msra.mxu0 0
      %683 = vmatprep.subr.bf16.mxu0 0
      %684 = vmatpush2.bf16.msra.mxu0 0
      %685 = vmatprep.subr.bf16.mxu0 0
      %686 = vmatpush2.bf16.msra.mxu0 0
      %687 = vmatprep.subr.bf16.mxu0 0
      %688 = vmatpush2.bf16.msra.mxu0 0
      %689 = vmatprep.subr.bf16.mxu0 0
      %690 = vmatpush2.bf16.msra.mxu0 0
      %691 = vmatprep.subr.bf16.mxu0 0
      %692 = vmatpush2.bf16.msra.mxu0 0
      %693 = vmatprep.subr.bf16.mxu0 0
      %694 = vmatpush2.bf16.msra.mxu0 0
      %695 = vmatprep.mubr.bf16.mxu0 0
      %696 = vmatmul.mubr.bf16.gmra.mxu0 %v640
      %v697 = vpop.f32.mrf.mxu0
      %v698 = vadd.f32 %v521, %v697
      %v699 = vpop.f32.mrf.mxu0
      %v700 = vadd.f32 %v521, %v699
      %v701 = vpop.f32.mrf.mxu0
      %v702 = vadd.f32 %v526, %v701
      %v703 = vpop.f32.mrf.mxu0
      %v704 = vadd.f32 %v526, %v703
      %705 = vmatprep.mubr.bf16.mxu0 0
      %706 = vmatmul.mubr.bf16.gmra.mxu0 %v643
      %v707 = vpop.f32.mrf.mxu0
      %v708 = vadd.f32 %v531, %v707
      %v709 = vpop.f32.mrf.mxu0
      %v710 = vadd.f32 %v531, %v709
      %v711 = vpop.f32.mrf.mxu0
      %v712 = vadd.f32 %v536, %v711
      %v713 = vpop.f32.mrf.mxu0
      %v714 = vadd.f32 %v536, %v713
      %715 = vmatprep.mubr.bf16.mxu0 0
      %716 = vmatmul.mubr.bf16.gmra.mxu0 %v646
      %v717 = vpop.f32.mrf.mxu0
      %v718 = vadd.f32 %v541, %v717
      %v719 = vpop.f32.mrf.mxu0
      %v720 = vadd.f32 %v541, %v719
      %v721 = vpop.f32.mrf.mxu0
      %v722 = vadd.f32 %v546, %v721
      %v723 = vpop.f32.mrf.mxu0
      %v724 = vadd.f32 %v546, %v723
      %725 = vmatprep.mubr.bf16.mxu0 0
      %726 = vmatmul.mubr.bf16.gmra.mxu0 %v649
      %v727 = vpop.f32.mrf.mxu0
      %v728 = vadd.f32 %v551, %v727
      %v729 = vpop.f32.mrf.mxu0
      %v730 = vadd.f32 %v551, %v729
      %v731 = vpop.f32.mrf.mxu0
      %v732 = vadd.f32 %v556, %v731
      %v733 = vpop.f32.mrf.mxu0
      %v734 = vadd.f32 %v556, %v733
      %735 = vmatprep.mubr.bf16.mxu0 0
      %736 = vmatmul.mubr.bf16.gmra.mxu0 %v652
      %v737 = vpop.f32.mrf.mxu0
      %v738 = vadd.f32 %v561, %v737
      %v739 = vpop.f32.mrf.mxu0
      %v740 = vadd.f32 %v561, %v739
      %v741 = vpop.f32.mrf.mxu0
      %v742 = vadd.f32 %v566, %v741
      %v743 = vpop.f32.mrf.mxu0
      %v744 = vadd.f32 %v566, %v743
      %745 = vmatprep.mubr.bf16.mxu0 0
      %746 = vmatmul.mubr.bf16.gmra.mxu0 %v655
      %v747 = vpop.f32.mrf.mxu0
      %v748 = vadd.f32 %v571, %v747
      %v749 = vpop.f32.mrf.mxu0
      %v750 = vadd.f32 %v571, %v749
      %v751 = vpop.f32.mrf.mxu0
      %v752 = vadd.f32 %v576, %v751
      %v753 = vpop.f32.mrf.mxu0
      %v754 = vadd.f32 %v576, %v753
      %755 = vmatprep.mubr.bf16.mxu0 0
      %756 = vmatmul.mubr.bf16.gmra.mxu0 %v658
      %v757 = vpop.f32.mrf.mxu0
      %v758 = vadd.f32 %v581, %v757
      %v759 = vpop.f32.mrf.mxu0
      %v760 = vadd.f32 %v581, %v759
      %v761 = vpop.f32.mrf.mxu0
      %v762 = vadd.f32 %v586, %v761
      %v763 = vpop.f32.mrf.mxu0
      %v764 = vadd.f32 %v586, %v763
      %765 = vmatprep.mubr.bf16.mxu0 0
      %766 = vmatmul.mubr.bf16.gmra.mxu0 %v661
      %v767 = vpop.f32.mrf.mxu0
      %v768 = vadd.f32 %v591, %v767
      %v769 = vpop.f32.mrf.mxu0
      %v770 = vadd.f32 %v591, %v769
      %v771 = vpop.f32.mrf.mxu0
      %v772 = vadd.f32 %v596, %v771
      %v773 = vpop.f32.mrf.mxu0
      %v774 = vadd.f32 %v596, %v773
      %775 = vdwg.mxu0
      %v776 = vmax.f32 %v698, 0.0
      %v777 = vmax.f32 %v700, 0.0
      %v778 = vmax.f32 %v702, 0.0
      %v779 = vmax.f32 %v704, 0.0
      %v780 = vmax.f32 %v708, 0.0
      %v781 = vmax.f32 %v710, 0.0
      %v782 = vmax.f32 %v712, 0.0
      %v783 = vmax.f32 %v714, 0.0
      %v784 = vmax.f32 %v718, 0.0
      %v785 = vmax.f32 %v720, 0.0
      %v786 = vmax.f32 %v722, 0.0
      %v787 = vmax.f32 %v724, 0.0
      %v788 = vmax.f32 %v728, 0.0
      %v789 = vmax.f32 %v730, 0.0
      %v790 = vmax.f32 %v732, 0.0
      %v791 = vmax.f32 %v734, 0.0
      %v792 = vmax.f32 %v738, 0.0
      %v793 = vmax.f32 %v740, 0.0
      %v794 = vmax.f32 %v742, 0.0
      %v795 = vmax.f32 %v744, 0.0
      %v796 = vmax.f32 %v748, 0.0
      %v797 = vmax.f32 %v750, 0.0
      %v798 = vmax.f32 %v752, 0.0
      %v799 = vmax.f32 %v754, 0.0
      %v800 = vmax.f32 %v758, 0.0
      %v801 = vmax.f32 %v760, 0.0
      %v802 = vmax.f32 %v762, 0.0
      %v803 = vmax.f32 %v764, 0.0
      %v804 = vmax.f32 %v768, 0.0
      %v805 = vmax.f32 %v770, 0.0
      %v806 = vmax.f32 %v772, 0.0
      %v807 = vmax.f32 %v774, 0.0
      %s808 = scalar_lea.vmem %s1, 192
      %v809 = vld [vmem:[%s808] sm:$0xf]
      %v810 = vld [vmem:[%s808 + $0x4] sm:$0xf]
      %v811 = vld [vmem:[%s808 + $0x8] sm:$0xf]
      %v812 = vld [vmem:[%s808 + $0xc] sm:$0xf]
      %v813 = vld [vmem:[%s808 + $0x10] sm:$0xf]
      %v814 = vld [vmem:[%s808 + $0x14] sm:$0xf]
      %v815 = vld [vmem:[%s808 + $0x18] sm:$0xf]
      %v816 = vld [vmem:[%s808 + $0x1c] sm:$0xf]
      %v817 = vpack.c.bf16 %v778, %v776
      %v818 = vpack.c.bf16 %v779, %v777
      %v819 = vpack.c.bf16 %v782, %v780
      %v820 = vpack.c.bf16 %v783, %v781
      %v821 = vpack.c.bf16 %v786, %v784
      %v822 = vpack.c.bf16 %v787, %v785
      %v823 = vpack.c.bf16 %v790, %v788
      %v824 = vpack.c.bf16 %v791, %v789
      %v825 = vpack.c.bf16 %v794, %v792
      %v826 = vpack.c.bf16 %v795, %v793
      %v827 = vpack.c.bf16 %v798, %v796
      %v828 = vpack.c.bf16 %v799, %v797
      %v829 = vpack.c.bf16 %v802, %v800
      %v830 = vpack.c.bf16 %v803, %v801
      %v831 = vpack.c.bf16 %v806, %v804
      %v832 = vpack.c.bf16 %v807, %v805
      %s833 = scalar_lea.vmem %s2, 384
      %v834 = vld [vmem:[%s833] sm:$0xff]
      %v835 = vld [vmem:[%s833 + $0x8] sm:$0xff]
      %v836 = vld [vmem:[%s833 + $0x10] sm:$0xff]
      %v837 = vld [vmem:[%s833 + $0x18] sm:$0xff]
      %v838 = vld [vmem:[%s833 + $0x20] sm:$0xff]
      %v839 = vld [vmem:[%s833 + $0x28] sm:$0xff]
      %v840 = vld [vmem:[%s833 + $0x30] sm:$0xff]
      %v841 = vld [vmem:[%s833 + $0x38] sm:$0xff]
      %843 = vset.pattern.permute.xlu0 0
      %844 = vperm.xlu0 %843, %v834
      %v845 = vpop.permute.xlu0 %844
      %848 = vset.pattern.permute.xlu0 0
      %849 = vperm.xlu0 %848, %v835
      %v850 = vpop.permute.xlu0 %849
      %853 = vset.pattern.permute.xlu0 0
      %854 = vperm.xlu0 %853, %v836
      %v855 = vpop.permute.xlu0 %854
      %858 = vset.pattern.permute.xlu0 0
      %859 = vperm.xlu0 %858, %v837
      %v860 = vpop.permute.xlu0 %859
      %863 = vset.pattern.permute.xlu0 0
      %864 = vperm.xlu0 %863, %v838
      %v865 = vpop.permute.xlu0 %864
      %868 = vset.pattern.permute.xlu0 0
      %869 = vperm.xlu0 %868, %v839
      %v870 = vpop.permute.xlu0 %869
      %873 = vset.pattern.permute.xlu0 0
      %874 = vperm.xlu0 %873, %v840
      %v875 = vpop.permute.xlu0 %874
      %878 = vset.pattern.permute.xlu0 0
      %879 = vperm.xlu0 %878, %v841
      %v880 = vpop.permute.xlu0 %879
      %v890 = vunpack.c.l.b16 %v809
      %v891 = vunpack.c.l.b16 %v810
      %v892 = vunpack.c.l.b16 %v811
      %v893 = vunpack.c.l.b16 %v812
      %v894 = vunpack.c.l.b16 %v813
      %v895 = vunpack.c.l.b16 %v814
      %v896 = vunpack.c.l.b16 %v815
      %v897 = vunpack.c.l.b16 %v816
      %v898 = vpack.c.b16 %v891, %v890
      %v899 = vpack.c.b16 %v893, %v892
      %v900 = vpack.c.b16 %v895, %v894
      %v901 = vpack.c.b16 %v897, %v896
      %906 = vmatprep.subr.bf16.mxu0 %v832
      %907 = vmatpush1.bf16.msra.mxu0 %v831
      %908 = vmatprep.subr.bf16.mxu0 %v830
      %909 = vmatpush1.bf16.msra.mxu0 %v829
      %910 = vmatprep.subr.bf16.mxu0 %v828
      %911 = vmatpush1.bf16.msra.mxu0 %v827
      %912 = vmatprep.subr.bf16.mxu0 %v826
      %913 = vmatpush1.bf16.msra.mxu0 %v825
      %914 = vmatprep.subr.bf16.mxu0 %v824
      %915 = vmatpush1.bf16.msra.mxu0 %v823
      %916 = vmatprep.subr.bf16.mxu0 %v822
      %917 = vmatpush1.bf16.msra.mxu0 %v821
      %918 = vmatprep.subr.bf16.mxu0 %v820
      %919 = vmatpush1.bf16.msra.mxu0 %v819
      %920 = vmatprep.subr.bf16.mxu0 %v818
      %921 = vmatpush1.bf16.msra.mxu0 %v817
      %922 = vmatprep.subr.bf16.mxu0 0
      %923 = vmatpush2.bf16.msra.mxu0 0
      %924 = vmatprep.subr.bf16.mxu0 0
      %925 = vmatpush2.bf16.msra.mxu0 0
      %926 = vmatprep.subr.bf16.mxu0 0
      %927 = vmatpush2.bf16.msra.mxu0 0
      %928 = vmatprep.subr.bf16.mxu0 0
      %929 = vmatpush2.bf16.msra.mxu0 0
      %930 = vmatprep.subr.bf16.mxu0 0
      %931 = vmatpush2.bf16.msra.mxu0 0
      %932 = vmatprep.subr.bf16.mxu0 0
      %933 = vmatpush2.bf16.msra.mxu0 0
      %934 = vmatprep.subr.bf16.mxu0 0
      %935 = vmatpush2.bf16.msra.mxu0 0
      %936 = vmatprep.subr.bf16.mxu0 0
      %937 = vmatpush2.bf16.msra.mxu0 0
      %938 = vmatprep.mubr.bf16.mxu0 0
      %939 = vmatmul.mubr.bf16.gmra.mxu0 %v898
      %v940 = vpop.f32.mrf.mxu0
      %v941 = vadd.f32 %v845, %v940
      %v942 = vpop.f32.mrf.mxu0
      %v943 = vadd.f32 %v845, %v942
      %v944 = vpop.f32.mrf.mxu0
      %v945 = vadd.f32 %v850, %v944
      %v946 = vpop.f32.mrf.mxu0
      %v947 = vadd.f32 %v850, %v946
      %948 = vmatprep.mubr.bf16.mxu0 0
      %949 = vmatmul.mubr.bf16.gmra.mxu0 %v899
      %v950 = vpop.f32.mrf.mxu0
      %v951 = vadd.f32 %v855, %v950
      %v952 = vpop.f32.mrf.mxu0
      %v953 = vadd.f32 %v855, %v952
      %v954 = vpop.f32.mrf.mxu0
      %v955 = vadd.f32 %v860, %v954
      %v956 = vpop.f32.mrf.mxu0
      %v957 = vadd.f32 %v860, %v956
      %958 = vmatprep.mubr.bf16.mxu0 0
      %959 = vmatmul.mubr.bf16.gmra.mxu0 %v900
      %v960 = vpop.f32.mrf.mxu0
      %v961 = vadd.f32 %v865, %v960
      %v962 = vpop.f32.mrf.mxu0
      %v963 = vadd.f32 %v865, %v962
      %v964 = vpop.f32.mrf.mxu0
      %v965 = vadd.f32 %v870, %v964
      %v966 = vpop.f32.mrf.mxu0
      %v967 = vadd.f32 %v870, %v966
      %968 = vmatprep.mubr.bf16.mxu0 0
      %969 = vmatmul.mubr.bf16.gmra.mxu0 %v901
      %v970 = vpop.f32.mrf.mxu0
      %v971 = vadd.f32 %v875, %v970
      %v972 = vpop.f32.mrf.mxu0
      %v973 = vadd.f32 %v875, %v972
      %v974 = vpop.f32.mrf.mxu0
      %v975 = vadd.f32 %v880, %v974
      %v976 = vpop.f32.mrf.mxu0
      %v977 = vadd.f32 %v880, %v976
      %978 = vdwg.mxu0
      %v979 = vmax.f32 %v941, 0.0
      %v980 = vmax.f32 %v943, 0.0
      %v981 = vmax.f32 %v945, 0.0
      %v982 = vmax.f32 %v947, 0.0
      %v983 = vmax.f32 %v951, 0.0
      %v984 = vmax.f32 %v953, 0.0
      %v985 = vmax.f32 %v955, 0.0
      %v986 = vmax.f32 %v957, 0.0
      %v987 = vmax.f32 %v961, 0.0
      %v988 = vmax.f32 %v963, 0.0
      %v989 = vmax.f32 %v965, 0.0
      %v990 = vmax.f32 %v967, 0.0
      %v991 = vmax.f32 %v971, 0.0
      %v992 = vmax.f32 %v973, 0.0
      %v993 = vmax.f32 %v975, 0.0
      %v994 = vmax.f32 %v977, 0.0
      %s995 = scalar_lea.vmem %s1, 256
      %v996 = vld [vmem:[%s995] sm:$0xf]
      %v997 = vld [vmem:[%s995 + $0x4] sm:$0xf]
      %v998 = vld [vmem:[%s995 + $0x8] sm:$0xf]
      %v999 = vld [vmem:[%s995 + $0xc] sm:$0xf]
      %v1000 = vpack.c.bf16 %v981, %v979
      %v1001 = vpack.c.bf16 %v982, %v980
      %v1002 = vpack.c.bf16 %v985, %v983
      %v1003 = vpack.c.bf16 %v986, %v984
      %v1004 = vpack.c.bf16 %v989, %v987
      %v1005 = vpack.c.bf16 %v990, %v988
      %v1006 = vpack.c.bf16 %v993, %v991
      %v1007 = vpack.c.bf16 %v994, %v992
      %s1008 = scalar_lea.vmem %s2, 512
      %v1009 = vld [vmem:[%s1008] sm:$0xff]
      %v1010 = vld [vmem:[%s1008 + $0x8] sm:$0xff]
      %v1011 = vld [vmem:[%s1008 + $0x10] sm:$0xff]
      %v1012 = vld [vmem:[%s1008 + $0x18] sm:$0xff]
      %1014 = vset.pattern.permute.xlu0 0
      %1015 = vperm.xlu0 %1014, %v1009
      %v1016 = vpop.permute.xlu0 %1015
      %1019 = vset.pattern.permute.xlu0 0
      %1020 = vperm.xlu0 %1019, %v1010
      %v1021 = vpop.permute.xlu0 %1020
      %1024 = vset.pattern.permute.xlu0 0
      %1025 = vperm.xlu0 %1024, %v1011
      %v1026 = vpop.permute.xlu0 %1025
      %1029 = vset.pattern.permute.xlu0 0
      %1030 = vperm.xlu0 %1029, %v1012
      %v1031 = vpop.permute.xlu0 %1030
      %v1037 = vunpack.c.l.b16 %v996
      %v1038 = vunpack.c.l.b16 %v997
      %v1039 = vunpack.c.l.b16 %v998
      %v1040 = vunpack.c.l.b16 %v999
      %v1041 = vpack.c.b16 %v1038, %v1037
      %v1042 = vpack.c.b16 %v1040, %v1039
      %v1044 = vsel %vm638, %v1041, 0
      %v1047 = vsel %vm638, %v1042, 0
      %1049 = vmatprep.subr.bf16.mxu0 0
      %1050 = vmatpush1.bf16.msra.mxu0 0
      %1051 = vmatprep.subr.bf16.mxu0 0
      %1052 = vmatpush1.bf16.msra.mxu0 0
      %1053 = vmatprep.subr.bf16.mxu0 0
      %1054 = vmatpush1.bf16.msra.mxu0 0
      %1055 = vmatprep.subr.bf16.mxu0 0
      %1056 = vmatpush1.bf16.msra.mxu0 0
      %1057 = vmatprep.subr.bf16.mxu0 %v1007
      %1058 = vmatpush1.bf16.msra.mxu0 %v1006
      %1059 = vmatprep.subr.bf16.mxu0 %v1005
      %1060 = vmatpush1.bf16.msra.mxu0 %v1004
      %1061 = vmatprep.subr.bf16.mxu0 %v1003
      %1062 = vmatpush1.bf16.msra.mxu0 %v1002
      %1063 = vmatprep.subr.bf16.mxu0 %v1001
      %1064 = vmatpush1.bf16.msra.mxu0 %v1000
      %1065 = vmatprep.subr.bf16.mxu0 0
      %1066 = vmatpush2.bf16.msra.mxu0 0
      %1067 = vmatprep.subr.bf16.mxu0 0
      %1068 = vmatpush2.bf16.msra.mxu0 0
      %1069 = vmatprep.subr.bf16.mxu0 0
      %1070 = vmatpush2.bf16.msra.mxu0 0
      %1071 = vmatprep.subr.bf16.mxu0 0
      %1072 = vmatpush2.bf16.msra.mxu0 0
      %1073 = vmatprep.subr.bf16.mxu0 0
      %1074 = vmatpush2.bf16.msra.mxu0 0
      %1075 = vmatprep.subr.bf16.mxu0 0
      %1076 = vmatpush2.bf16.msra.mxu0 0
      %1077 = vmatprep.subr.bf16.mxu0 0
      %1078 = vmatpush2.bf16.msra.mxu0 0
      %1079 = vmatprep.subr.bf16.mxu0 0
      %1080 = vmatpush2.bf16.msra.mxu0 0
      %1081 = vmatprep.mubr.bf16.mxu0 0
      %1082 = vmatmul.mubr.bf16.gmra.mxu0 %v1044
      %v1083 = vpop.f32.mrf.mxu0
      %v1084 = vadd.f32 %v1016, %v1083
      %v1085 = vpop.f32.mrf.mxu0
      %v1086 = vadd.f32 %v1016, %v1085
      %v1087 = vpop.f32.mrf.mxu0
      %v1088 = vadd.f32 %v1021, %v1087
      %v1089 = vpop.f32.mrf.mxu0
      %v1090 = vadd.f32 %v1021, %v1089
      %1091 = vmatprep.mubr.bf16.mxu0 0
      %1092 = vmatmul.mubr.bf16.gmra.mxu0 %v1047
      %v1093 = vpop.f32.mrf.mxu0
      %v1094 = vadd.f32 %v1026, %v1093
      %v1095 = vpop.f32.mrf.mxu0
      %v1096 = vadd.f32 %v1026, %v1095
      %v1097 = vpop.f32.mrf.mxu0
      %v1098 = vadd.f32 %v1031, %v1097
      %v1099 = vpop.f32.mrf.mxu0
      %v1100 = vadd.f32 %v1031, %v1099
      %1101 = vdwg.mxu0
      %v1102 = vmax.f32 %v1084, 0.0
      %v1103 = vmax.f32 %v1086, 0.0
      %v1104 = vmax.f32 %v1088, 0.0
      %v1105 = vmax.f32 %v1090, 0.0
      %v1106 = vmax.f32 %v1094, 0.0
      %v1107 = vmax.f32 %v1096, 0.0
      %v1108 = vmax.f32 %v1098, 0.0
      %v1109 = vmax.f32 %v1100, 0.0
      %s1110 = scalar_lea.vmem %s1, 320
      %v1111 = vld [vmem:[%s1110] sm:$0xf]
      %v1112 = vld [vmem:[%s1110 + $0x4] sm:$0xf]
      %v1113 = vpack.c.bf16 %v1104, %v1102
      %v1114 = vpack.c.bf16 %v1105, %v1103
      %v1115 = vpack.c.bf16 %v1108, %v1106
      %v1116 = vpack.c.bf16 %v1109, %v1107
      %s1117 = scalar_lea.vmem %s2, 640
      %v1118 = vld [vmem:[%s1117] sm:$0xff]
      %v1119 = vld [vmem:[%s1117 + $0x8] sm:$0xff]
      %1121 = vset.pattern.permute.xlu0 0
      %1122 = vperm.xlu0 %1121, %v1118
      %v1123 = vpop.permute.xlu0 %1122
      %1126 = vset.pattern.permute.xlu0 0
      %1127 = vperm.xlu0 %1126, %v1119
      %v1128 = vpop.permute.xlu0 %1127
      %v1132 = vunpack.c.l.b16 %v1111
      %v1133 = vunpack.c.l.b16 %v1112
      %v1134 = vpack.c.b16 %v1133, %v1132
      %v1136 = vsel %vm374, %v1134, 0
      %1138 = vmatprep.subr.bf16.mxu0 0
      %1139 = vmatpush1.bf16.msra.mxu0 0
      %1140 = vmatprep.subr.bf16.mxu0 0
      %1141 = vmatpush1.bf16.msra.mxu0 0
      %1142 = vmatprep.subr.bf16.mxu0 0
      %1143 = vmatpush1.bf16.msra.mxu0 0
      %1144 = vmatprep.subr.bf16.mxu0 0
      %1145 = vmatpush1.bf16.msra.mxu0 0
      %1146 = vmatprep.subr.bf16.mxu0 0
      %1147 = vmatpush1.bf16.msra.mxu0 0
      %1148 = vmatprep.subr.bf16.mxu0 0
      %1149 = vmatpush1.bf16.msra.mxu0 0
      %1150 = vmatprep.subr.bf16.mxu0 %v1116
      %1151 = vmatpush1.bf16.msra.mxu0 %v1115
      %1152 = vmatprep.subr.bf16.mxu0 %v1114
      %1153 = vmatpush1.bf16.msra.mxu0 %v1113
      %1154 = vmatprep.subr.bf16.mxu0 0
      %1155 = vmatpush2.bf16.msra.mxu0 0
      %1156 = vmatprep.subr.bf16.mxu0 0
      %1157 = vmatpush2.bf16.msra.mxu0 0
      %1158 = vmatprep.subr.bf16.mxu0 0
      %1159 = vmatpush2.bf16.msra.mxu0 0
      %1160 = vmatprep.subr.bf16.mxu0 0
      %1161 = vmatpush2.bf16.msra.mxu0 0
      %1162 = vmatprep.subr.bf16.mxu0 0
      %1163 = vmatpush2.bf16.msra.mxu0 0
      %1164 = vmatprep.subr.bf16.mxu0 0
      %1165 = vmatpush2.bf16.msra.mxu0 0
      %1166 = vmatprep.subr.bf16.mxu0 0
      %1167 = vmatpush2.bf16.msra.mxu0 0
      %1168 = vmatprep.subr.bf16.mxu0 0
      %1169 = vmatpush2.bf16.msra.mxu0 0
      %1170 = vmatprep.mubr.bf16.mxu0 0
      %1171 = vmatmul.mubr.bf16.gmra.mxu0 %v1136
      %v1172 = vpop.f32.mrf.mxu0
      %v1173 = vadd.f32 %v1123, %v1172
      %v1174 = vpop.f32.mrf.mxu0
      %v1175 = vadd.f32 %v1123, %v1174
      %v1176 = vpop.f32.mrf.mxu0
      %v1177 = vadd.f32 %v1128, %v1176
      %v1178 = vpop.f32.mrf.mxu0
      %v1179 = vadd.f32 %v1128, %v1178
      %1180 = vdwg.mxu0
      %v1181 = vmax.f32 %v1173, 0.0
      %v1182 = vmax.f32 %v1175, 0.0
      %v1183 = vmax.f32 %v1177, 0.0
      %v1184 = vmax.f32 %v1179, 0.0
      %s1185 = scalar_lea.vmem %s1, 384
      %v1186 = vld [vmem:[%s1185] sm:$0xf]
      %v1187 = vpack.c.bf16 %v1183, %v1181
      %v1188 = vpack.c.bf16 %v1184, %v1182
      %s1189 = scalar_lea.vmem %s2, 768
      %v1190 = vld [vmem:[%s1189] sm:$0xff]
      %1192 = vset.pattern.permute.xlu0 0
      %1193 = vperm.xlu0 %1192, %v1190
      %v1194 = vpop.permute.xlu0 %1193
      %vm1196 = vcmask 130048
      %v1198 = vsel %vm1196, %v1186, 0
      %1200 = vmatprep.subr.bf16.mxu0 0
      %1201 = vmatpush1.bf16.msra.mxu0 0
      %1202 = vmatprep.subr.bf16.mxu0 0
      %1203 = vmatpush1.bf16.msra.mxu0 0
      %1204 = vmatprep.subr.bf16.mxu0 0
      %1205 = vmatpush1.bf16.msra.mxu0 0
      %1206 = vmatprep.subr.bf16.mxu0 0
      %1207 = vmatpush1.bf16.msra.mxu0 0
      %1208 = vmatprep.subr.bf16.mxu0 0
      %1209 = vmatpush1.bf16.msra.mxu0 0
      %1210 = vmatprep.subr.bf16.mxu0 0
      %1211 = vmatpush1.bf16.msra.mxu0 0
      %1212 = vmatprep.subr.bf16.mxu0 0
      %1213 = vmatpush1.bf16.msra.mxu0 0
      %1214 = vmatprep.subr.bf16.mxu0 %v1188
      %1215 = vmatpush1.bf16.msra.mxu0 %v1187
      %1216 = vmatprep.subr.bf16.mxu0 0
      %1217 = vmatpush2.bf16.msra.mxu0 0
      %1218 = vmatprep.subr.bf16.mxu0 0
      %1219 = vmatpush2.bf16.msra.mxu0 0
      %1220 = vmatprep.subr.bf16.mxu0 0
      %1221 = vmatpush2.bf16.msra.mxu0 0
      %1222 = vmatprep.subr.bf16.mxu0 0
      %1223 = vmatpush2.bf16.msra.mxu0 0
      %1224 = vmatprep.subr.bf16.mxu0 0
      %1225 = vmatpush2.bf16.msra.mxu0 0
      %1226 = vmatprep.subr.bf16.mxu0 0
      %1227 = vmatpush2.bf16.msra.mxu0 0
      %1228 = vmatprep.subr.bf16.mxu0 0
      %1229 = vmatpush2.bf16.msra.mxu0 0
      %1230 = vmatprep.subr.bf16.mxu0 0
      %1231 = vmatpush2.bf16.msra.mxu0 0
      %1232 = vmatprep.mubr.bf16.mxu0 0
      %1233 = vmatmul.mubr.bf16.gmra.mxu0 %v1198
      %v1234 = vpop.f32.mrf.mxu0
      %v1235 = vadd.f32 %v1194, %v1234
      %v1236 = vpop.f32.mrf.mxu0
      %v1237 = vadd.f32 %v1194, %v1236
      %v1238 = vpop.f32.mrf.mxu0
      %v1239 = vpop.f32.mrf.mxu0
      %1240 = vdwg.mxu0
      %v1241 = vtanh.pop %v1235
      %v1242 = vtanh.pop %v1237
      %v1243 = vmul.f32 %v1241, 2.0
      %v1244 = vmul.f32 %v1242, 2.0
      %v1245 = vadd.f32 %v1243, 0.5
      %v1246 = vadd.f32 %v1244, 0.5
      %1247 = vst [vmem:[%s172] sm:$0xff] %v1245
      %1248 = vst [vmem:[%s172 + $0x8] sm:$0xff] %v1246
      %s1249 = smul.u32 2, %s14
      %p1250 = scmp.lt.s32.totalorder %s1249, 3
      %s1251 = scalar_select %p1250, %s1249, 3
      %s1252 = smul.addr %s1251, 8
      %s1253 = scalar_lea.vmem %s3, %s1252
      // Predicated region
      $region33: #{actor_forward.1} parent=31 // pred_check
        %p1254 = pneg %p100
      $region34: #{actor_forward.1} parent=31 // pred_check_branch
        %1256 = sbr.rel (%p1254) target = $region36
      $region35: #{actor_forward.1} parent=31 // pred_region
        %s1257 = smul.u32 2, %s14
      $region36: #{actor_forward.1} parent=31 // pred_fallthru
        _
    $region32: #{actor_forward.1} parent=5 // pred_fallthru
      _
    %p1258 = scmp.le.s32.totalorder 2, %s9
    // Predicated region
    $region37: #{actor_forward.1} parent=5 // pred_check
      %p1259 = pneg %p1258
    $region38: #{actor_forward.1} parent=5 // pred_check_branch
      %1261 = sbr.rel (%p1259) target = $region40
    $region39: #{actor_forward.1} parent=5 // pred_region
      %s1262 = ssub.s32 %s9, 2
      // Predicated region
      $region41: #{actor_forward.1} parent=39 // pred_check
        %p1263 = pneg %p106
      $region42: #{actor_forward.1} parent=39 // pred_check_branch
        %1265 = sbr.rel (%p1263) target = $region44
      $region43: #{actor_forward.1} parent=39 // pred_region
        %s1266 = smul.u32 2, %s15
        %p1267 = scmp.lt.s32.totalorder %s1266, 3
        %s1268 = scalar_select %p1267, %s1266, 3
        %s1269 = smul.addr %s1268, 8
        %s1270 = scalar_lea.vmem %s3, %s1269
      $region44: #{actor_forward.1} parent=39 // pred_fallthru
        _
    $region40: #{actor_forward.1} parent=5 // pred_fallthru
      _
  $region6: #{actor_forward.1} parent=0 // loop_footer
    %s13 = sadd.s32 1, %s9
  $region7: #{actor_forward.1} parent=0 // loop_footer_branch
    %8 = sbr.rel target = $region3
  $region8: #{actor_forward.1} parent=0 // loop_exit
    _

</llo_original>
